<compile_context>
chip_gen: v6e
topology: v6e:2x2x1
jax: 0.10.0
libtpu: 0.0.40
codegen_flags: <defaults>
</compile_context>

<pallas_src>
import functools

import jax
import jax.numpy as jnp
from jax.experimental import pallas as pl
from jax.experimental.pallas import tpu as pltpu


# --------------------------------------------------------------------------- #
# Small helpers                                                               #
# --------------------------------------------------------------------------- #
def _align_up(n, a):
    return ((n + a - 1) // a) * a


def _pad_axis(a, axis, new_size):
    pad = new_size - a.shape[axis]
    if pad <= 0:
        return a
    widths = [(0, 0)] * a.ndim
    widths[axis] = (0, pad)
    return jnp.pad(a, widths)


def _vmem_capacity_bytes():
    """Physical per-core VMEM; conservative (v7x-sized) fallback if unknown."""
    cap = 0
    try:
        info = pltpu.get_tpu_info()
        cap = int(getattr(info, "vmem_capacity_bytes", 0) or 0)
    except Exception:
        cap = 0
    if cap <= 0:
        cap = 64 * 1024 * 1024
    return max(32 * 1024 * 1024, min(cap, 256 * 1024 * 1024))


def _bf16_eup_ok():
    """bf16 exp only on chips with a bf16 EUP (v6e / v7x); v5e and older keep f32."""
    try:
        kind = jax.devices()[0].device_kind.lower()
        return ("v6" in kind) or ("v7" in kind)
    except Exception:
        return False


def _select_proj_rows(N, E, w_bytes, qk_bytes, align, vmem_cap):
    """Row-tile TN for kernel 1, sized against the chip's VMEM."""
    budget = int(vmem_cap * 0.6)
    TN = min(512, _align_up(N, align))

    def footprint(tn):
        x_in = 2 * tn * E * 4                      # double-buffered x blocks (f32)
        w = 2 * (E * 2 * E * w_bytes)              # fused weight (worst case 2 buffers)
        small = 8 * E * 4                          # bias + LN params
        outs = 2 * tn * 2 * E * qk_bytes           # double-buffered fused out blocks
        tmp = 6 * tn * E * 4                       # LN temporaries + xn + acc
        return x_in + w + small + outs + tmp

    while footprint(TN) > budget and TN > align:
        TN = max(align, ((TN // 2) // align) * align)
    return TN


def _select_attn_tiles(BH, T, D, qk_bytes, out_bytes, vmem_cap):
    """(head-batch block GB, query tile TQ) for kernel 2, sized against chip VMEM."""
    budget = int(vmem_cap * 0.6)
    GB = min(8, BH)
    TQ = min(256, _align_up(T, 8))

    def footprint(gb, tq):
        q_in = 2 * gb * tq * D * qk_bytes          # double-buffered Q blocks
        k_in = 2 * gb * T * D * qk_bytes           # double-buffered K blocks
        out = 2 * gb * tq * T * out_bytes          # double-buffered out blocks
        tmp = 3 * gb * tq * T * 4                  # s / e / p f32 temporaries
        return q_in + k_in + out + tmp

    while footprint(GB, TQ) > budget:
        if GB > 1:
            GB = max(1, GB // 2)                   # shrink head-batch first (HBM-bound)
        elif TQ > 8:
            TQ = max(8, ((TQ // 2) // 8) * 8)
        else:
            break
    return GB, TQ


# --------------------------------------------------------------------------- #
# Kernel 1: LayerNorm + fused [Q|K] projection over row tiles                 #
# --------------------------------------------------------------------------- #
def _ln_qkproj_kernel(x_ref, w_ref, b_ref, g_ref, beta_ref, qk_ref, *, eps, mxu_dtype):
    x = x_ref[...].astype(jnp.float32)                       # (TN, E)

    # LayerNorm over the embed dim (two-pass variance for numerical stability).
    mean = jnp.mean(x, axis=-1, keepdims=True)
    xc = x - mean
    var = jnp.mean(xc * xc, axis=-1, keepdims=True)
    xn = xc * jax.lax.rsqrt(var + eps)
    xn = xn * g_ref[...] + beta_ref[...]

    # Fused Q/K projection: one MXU pass over [Wq*scale | Wk], f32 accumulation.
    y = jnp.dot(xn.astype(mxu_dtype), w_ref[...],
                preferred_element_type=jnp.float32) + b_ref[...]     # (TN, 2E)
    qk_ref[...] = y.astype(qk_ref.dtype)


# --------------------------------------------------------------------------- #
# Kernel 2: batched-over-heads scaled-dot-product + softmax -> attention graph #
# --------------------------------------------------------------------------- #
def _attn_graph_kernel(q_ref, k_ref, out_ref, *, approx_recip, exp_dtype):
    q = q_ref[...]                                            # (GB, TQ, D)
    k = k_ref[...]                                            # (GB, T , D)
    # Batched contraction on the last dim: heads are the batch dim, K is consumed
    # untransposed (no XLU transpose, no per-head lane slicing).
    s = jnp.einsum('bqd,bkd->bqk', q, k,
                   preferred_element_type=jnp.float32)        # (GB, TQ, T) f32
    s = s - jnp.max(s, axis=-1, keepdims=True)                # f32; exp args <= 0
    e = jnp.exp(s.astype(exp_dtype))                          # bf16 EUP on v6e/v7x fast path
    denom = jnp.sum(e, axis=-1, keepdims=True, dtype=jnp.float32)   # f32 row-sum
    inv = pl.reciprocal(denom, approx=approx_recip).astype(exp_dtype)
    out_ref[...] = (e * inv).astype(out_ref.dtype)            # one bulk slab store


# --------------------------------------------------------------------------- #
# Wrapper                                                                     #
# --------------------------------------------------------------------------- #
def pa_decoder_san_global_agen(x_tbe, wq, bq, wk, bk, gamma, beta, num_heads, *,
                               qk_dtype=jnp.bfloat16, out_dtype=jnp.bfloat16,
                               approx_recip=True, softmax_dtype=None, eps=1e-5):
    """x_tbe: (T, B, E).  Returns the attention graph of shape (B*H, T, T).

    Defaults are the fast path: bf16 MXU operands / q,k intermediates, bf16 attention
    output, approx EUP reciprocal (rows sum to 1 only to ~1e-3), bf16 exp on chips with a
    bf16 EUP.  LayerNorm, matmul accumulation, max-subtraction and row-sums stay in f32.
    Pass qk_dtype/out_dtype=float32, approx_recip=False, softmax_dtype=float32 for the
    precise path.
    """
    T, B, E = x_tbe.shape
    H = num_heads
    assert E % H == 0, "embed_dim must be divisible by num_heads"
    D = E // H
    scale = float(D) ** -0.5

    if softmax_dtype is None:
        softmax_dtype = (jnp.bfloat16
                         if (jnp.dtype(out_dtype) == jnp.dtype(jnp.bfloat16) and _bf16_eup_ok())
                         else jnp.float32)

    vmem_cap = _vmem_capacity_bytes()
    vmem_limit = min(int(vmem_cap * 0.85), 120 * 1024 * 1024)
    qk_bytes = jnp.dtype(qk_dtype).itemsize
    out_bytes = jnp.dtype(out_dtype).itemsize

    # ---- kernel 1: LayerNorm + fused Q/K projection over flattened rows ---- #
    N = T * B
    x_rows = x_tbe.reshape(N, E)                  # free view: row = t*B + b (no transpose)
    row_align = 16 if qk_bytes < 4 else 8         # bf16 vregs pack 16 sublanes
    TN = _select_proj_rows(N, E, qk_bytes, qk_bytes, row_align, vmem_cap)
    Npad = _align_up(N, TN)
    x_rows_p = _pad_axis(x_rows, 0, Npad)

    # Fused weight [Wq*scale | Wk]; q-scale folded into the (tiny) weight in f32.
    w_fused = jnp.concatenate([wq * scale, wk], axis=1).astype(qk_dtype)       # (E, 2E)
    b_fused = jnp.concatenate([bq * scale, bk], axis=0).reshape(1, 2 * E).astype(jnp.float32)
    g2 = gamma.reshape(1, E).astype(jnp.float32)
    be2 = beta.reshape(1, E).astype(jnp.float32)

    kernel1 = functools.partial(_ln_qkproj_kernel, eps=eps, mxu_dtype=qk_dtype)

    def run_proj(single_buffer_invariants):
        inv = {"pipeline_mode": pl.Buffered(1)} if single_buffer_invariants else {}
        return pl.pallas_call(
            kernel1,
            out_shape=jax.ShapeDtypeStruct((Npad, 2 * E), qk_dtype),
            grid=(Npad // TN,),
            in_specs=[
                pl.BlockSpec((TN, E), lambda i: (i, 0)),              # x rows
                pl.BlockSpec((E, 2 * E), lambda i: (0, 0), **inv),    # fused W (invariant)
                pl.BlockSpec((1, 2 * E), lambda i: (0, 0), **inv),    # fused bias
                pl.BlockSpec((1, E), lambda i: (0, 0), **inv),        # LN gamma
                pl.BlockSpec((1, E), lambda i: (0, 0), **inv),        # LN beta
            ],
            out_specs=pl.BlockSpec((TN, 2 * E), lambda i: (i, 0)),
            compiler_params=pltpu.CompilerParams(
                dimension_semantics=("parallel",),
                vmem_limit_bytes=vmem_limit),
        )(x_rows_p, w_fused, b_fused, g2, be2)

    try:
        qk_rows = run_proj(True)                  # single-buffer invariant weights
    except Exception:
        qk_rows = run_proj(False)                 # fallback: default double-buffering

    qk_rows = qk_rows[:N]

    # ---- head-major relayout in XLA (layout plumbing, q/k split fuses into it) ---- #
    q_rows = qk_rows[:, :E]
    k_rows = qk_rows[:, E:]
    qh = q_rows.reshape(T, B, H, D).transpose(1, 2, 0, 3).reshape(B * H, T, D)
    kh = k_rows.reshape(T, B, H, D).transpose(1, 2, 0, 3).reshape(B * H, T, D)

    # ---- kernel 2: batched per-head QK^T + softmax ------------------------- #
    BH = B * H
    GB, TQ = _select_attn_tiles(BH, T, D, qk_bytes, out_bytes, vmem_cap)
    BHpad = _align_up(BH, GB)
    Tpad = _align_up(T, TQ)
    # Pad head-batch and query axes only (never the key/softmax axis).
    qh = _pad_axis(_pad_axis(qh, 0, BHpad), 1, Tpad)
    kh = _pad_axis(kh, 0, BHpad)

    kernel2 = functools.partial(_attn_graph_kernel,
                                approx_recip=approx_recip, exp_dtype=softmax_dtype)

    attn = pl.pallas_call(
        kernel2,
        out_shape=jax.ShapeDtypeStruct((BHpad, Tpad, T), out_dtype),
        grid=(BHpad // GB, Tpad // TQ),
        in_specs=[
            pl.BlockSpec((GB, TQ, D), lambda g, t: (g, t, 0)),   # Q tile
            pl.BlockSpec((GB, T, D), lambda g, t: (g, 0, 0)),    # K (full seq, reused over t)
        ],
        out_specs=pl.BlockSpec((GB, TQ, T), lambda g, t: (g, t, 0)),
        compiler_params=pltpu.CompilerParams(
            # Query-tile axis innermost and "arbitrary": K block fetched once per g,
            # and megacore never splits along it.
            dimension_semantics=("parallel", "arbitrary"),
            vmem_limit_bytes=vmem_limit),
    )(qh, kh)

    if BHpad != BH or Tpad != T:
        attn = attn[:BH, :T, :]
    # fairseq raw attention-weight layout: (bsz * num_heads, tgt_len, src_len)
    return attn


# --------------------------------------------------------------------------- #
# Pure-JAX reference                                                          #
# --------------------------------------------------------------------------- #
def _reference(x_tbe, wq, bq, wk, bk, gamma, beta, num_heads):
    T, B, E = x_tbe.shape
    H = num_heads
    D = E // H
    scale = float(D) ** -0.5
    hi = jax.lax.Precision.HIGHEST
    x = x_tbe.astype(jnp.float32)
    mean = x.mean(-1, keepdims=True)
    var = ((x - mean) ** 2).mean(-1, keepdims=True)
    xn = (x - mean) / jnp.sqrt(var + 1e-5) * gamma + beta
    q = (jnp.einsum('tbe,ef->tbf', xn, wq, precision=hi) + bq) * scale
    k = jnp.einsum('tbe,ef->tbf', xn, wk, precision=hi) + bk
    qh = q.reshape(T, B, H, D).transpose(1, 2, 0, 3).reshape(B * H, T, D)
    kh = k.reshape(T, B, H, D).transpose(1, 2, 0, 3).reshape(B * H, T, D)
    s = jnp.einsum('btd,bsd->bts', qh, kh, precision=hi)
    return jax.nn.softmax(s, axis=-1)


if __name__ == "__main__":
    def run_case(T, B, E, H, *, precise):
        key = jax.random.PRNGKey(0)
        kx, kwq, kbq, kwk, kbk, kg, kbt = jax.random.split(key, 7)
        x = jax.random.normal(kx, (T, B, E), dtype=jnp.float32)
        # nn.Linear weights stored already-transposed: y = x @ W (+ b)
        wq = jax.random.normal(kwq, (E, E), dtype=jnp.float32) * 0.1
        bq = jax.random.normal(kbq, (E,), dtype=jnp.float32) * 0.1
        wk = jax.random.normal(kwk, (E, E), dtype=jnp.float32) * 0.1
        bk = jax.random.normal(kbk, (E,), dtype=jnp.float32) * 0.1
        gamma = 1.0 + 0.1 * jax.random.normal(kg, (E,), dtype=jnp.float32)
        beta = 0.05 * jax.random.normal(kbt, (E,), dtype=jnp.float32)

        ref = _reference(x, wq, bq, wk, bk, gamma, beta, H)
        if precise:
            out = pa_decoder_san_global_agen(
                x, wq, bq, wk, bk, gamma, beta, H,
                qk_dtype=jnp.float32, out_dtype=jnp.float32,
                approx_recip=False, softmax_dtype=jnp.float32)
            tol = 1e-4
        else:
            out = pa_decoder_san_global_agen(x, wq, bq, wk, bk, gamma, beta, H)
            tol = 2e-2
        out = jax.block_until_ready(out)
        assert out.shape == (B * H, T, T), out.shape
        err = float(jnp.max(jnp.abs(out.astype(jnp.float32) - ref)))
        assert err <= tol, (T, B, E, H, precise, err)

    # seq_len=8, batch=2, decoder_embed_dim=32, heads=4
    run_case(8, 2, 32, 4, precise=True)    # precise f32 path, tile-divisible shapes
    run_case(8, 2, 32, 4, precise=False)   # default fast path (bf16 store / intermediates)
    run_case(9, 3, 32, 4, precise=True)    # padding path (non-divisible row / query / BH axes)

    print("KERNEL_OK")
</pallas_src>

<mosaic_0001>
module attributes {stable_mosaic.version = 11 : i64} {
  func.func @_ln_qkproj_kernel(%arg0: i32, %arg1: memref<16x32xf32, #tpu.memory_space<vmem>>, %arg2: memref<32x64xf32, #tpu.memory_space<vmem>>, %arg3: memref<1x64xf32, #tpu.memory_space<vmem>>, %arg4: memref<1x32xf32, #tpu.memory_space<vmem>>, %arg5: memref<1x32xf32, #tpu.memory_space<vmem>>, %arg6: memref<16x64xf32, #tpu.memory_space<vmem>>) attributes {dimension_semantics = [#tpu.dimension_semantics<parallel>], iteration_bounds = array<i64: 1>, scalar_prefetch = 0 : i64, scratch_operands = 0 : i64, tpu.core_type = #tpu.core_type<tc>, window_params = [{transform_indices = @transform_0, window_bounds = array<i64: 16, 32>}, {pipeline_mode = #tpu.pipeline_mode<synchronous>, transform_indices = @transform_1, window_bounds = array<i64: 32, 64>}, {pipeline_mode = #tpu.pipeline_mode<synchronous>, transform_indices = @transform_2, window_bounds = array<i64: 1, 64>}, {pipeline_mode = #tpu.pipeline_mode<synchronous>, transform_indices = @transform_3, window_bounds = array<i64: 1, 32>}, {pipeline_mode = #tpu.pipeline_mode<synchronous>, transform_indices = @transform_4, window_bounds = array<i64: 1, 32>}, {transform_indices = @transform_5, window_bounds = array<i64: 16, 64>}]} {
    %c0 = arith.constant 0 : index
    %c0_0 = arith.constant 0 : index
    %0 = vector.load %arg1[%c0, %c0_0] : memref<16x32xf32, #tpu.memory_space<vmem>>, vector<16x32xf32>
    %cst = arith.constant dense<0.000000e+00> : vector<16xf32>
    %1 = vector.multi_reduction <add>, %0, %cst [1] : vector<16x32xf32> to vector<16xf32>
    %2 = vector.shape_cast %1 : vector<16xf32> to vector<16x1xf32>
    %cst_1 = arith.constant 3.200000e+01 : f32
    %3 = vector.broadcast %cst_1 : f32 to vector<16x1xf32>
    %4 = arith.divf %2, %3 : vector<16x1xf32>
    %5 = vector.broadcast %4 : vector<16x1xf32> to vector<16x32xf32>
    %6 = arith.subf %0, %5 : vector<16x32xf32>
    %7 = arith.mulf %6, %6 : vector<16x32xf32>
    %cst_2 = arith.constant dense<0.000000e+00> : vector<16xf32>
    %8 = vector.multi_reduction <add>, %7, %cst_2 [1] : vector<16x32xf32> to vector<16xf32>
    %9 = vector.shape_cast %8 : vector<16xf32> to vector<16x1xf32>
    %cst_3 = arith.constant 3.200000e+01 : f32
    %10 = vector.broadcast %cst_3 : f32 to vector<16x1xf32>
    %11 = arith.divf %9, %10 : vector<16x1xf32>
    %cst_4 = arith.constant 9.99999974E-6 : f32
    %12 = vector.broadcast %cst_4 : f32 to vector<16x1xf32>
    %13 = arith.addf %11, %12 : vector<16x1xf32>
    %14 = math.rsqrt %13 : vector<16x1xf32>
    %15 = vector.broadcast %14 : vector<16x1xf32> to vector<16x32xf32>
    %16 = arith.mulf %6, %15 : vector<16x32xf32>
    %c0_5 = arith.constant 0 : index
    %c0_6 = arith.constant 0 : index
    %17 = vector.load %arg4[%c0_5, %c0_6] : memref<1x32xf32, #tpu.memory_space<vmem>>, vector<1x32xf32>
    %18 = vector.broadcast %17 : vector<1x32xf32> to vector<16x32xf32>
    %19 = arith.mulf %16, %18 : vector<16x32xf32>
    %c0_7 = arith.constant 0 : index
    %c0_8 = arith.constant 0 : index
    %20 = vector.load %arg5[%c0_7, %c0_8] : memref<1x32xf32, #tpu.memory_space<vmem>>, vector<1x32xf32>
    %21 = vector.broadcast %20 : vector<1x32xf32> to vector<16x32xf32>
    %22 = arith.addf %19, %21 : vector<16x32xf32>
    %c0_9 = arith.constant 0 : index
    %c0_10 = arith.constant 0 : index
    %23 = vector.load %arg2[%c0_9, %c0_10] : memref<32x64xf32, #tpu.memory_space<vmem>>, vector<32x64xf32>
    %cst_11 = arith.constant dense<0.000000e+00> : vector<16x64xf32>
    %24 = tpu.matmul %22, %23, %cst_11 {dimension_numbers = #tpu.dot_dimension_numbers<[1], [0], [0], [1], [0, 0, 1, 1], [], []>} : vector<16x32xf32>, vector<32x64xf32>, vector<16x64xf32> -> vector<16x64xf32>
    %c0_12 = arith.constant 0 : index
    %c0_13 = arith.constant 0 : index
    %25 = vector.load %arg3[%c0_12, %c0_13] : memref<1x64xf32, #tpu.memory_space<vmem>>, vector<1x64xf32>
    %26 = vector.broadcast %25 : vector<1x64xf32> to vector<16x64xf32>
    %27 = arith.addf %24, %26 : vector<16x64xf32>
    %c0_14 = arith.constant 0 : index
    %c0_15 = arith.constant 0 : index
    %28 = vector.load %arg6[%c0_14, %c0_15] : memref<16x64xf32, #tpu.memory_space<vmem>>, vector<16x64xf32>
    tpu.vector_store %arg6[%c0_14, %c0_15], %27 {strides = array<i32>} : memref<16x64xf32, #tpu.memory_space<vmem>>, vector<16x64xf32>,
    return
  }
  func.func @transform_0(%arg0: i32) -> (i32, i32) {
    %c0_i32 = arith.constant 0 : i32
    %c0_i32_0 = arith.constant 0 : i32
    return %arg0, %c0_i32 : i32, i32
  }
  func.func @transform_1(%arg0: i32) -> (i32, i32) {
    %c0_i32 = arith.constant 0 : i32
    %c0_i32_0 = arith.constant 0 : i32
    %c0_i32_1 = arith.constant 0 : i32
    return %c0_i32, %c0_i32_0 : i32, i32
  }
  func.func @transform_2(%arg0: i32) -> (i32, i32) {
    %c0_i32 = arith.constant 0 : i32
    %c0_i32_0 = arith.constant 0 : i32
    %c0_i32_1 = arith.constant 0 : i32
    return %c0_i32, %c0_i32_0 : i32, i32
  }
  func.func @transform_3(%arg0: i32) -> (i32, i32) {
    %c0_i32 = arith.constant 0 : i32
    %c0_i32_0 = arith.constant 0 : i32
    %c0_i32_1 = arith.constant 0 : i32
    return %c0_i32, %c0_i32_0 : i32, i32
  }
  func.func @transform_4(%arg0: i32) -> (i32, i32) {
    %c0_i32 = arith.constant 0 : i32
    %c0_i32_0 = arith.constant 0 : i32
    %c0_i32_1 = arith.constant 0 : i32
    return %c0_i32, %c0_i32_0 : i32, i32
  }
  func.func @transform_5(%arg0: i32) -> (i32, i32) {
    %c0_i32 = arith.constant 0 : i32
    %c0_i32_0 = arith.constant 0 : i32
    return %arg0, %c0_i32 : i32, i32
  }
}

module attributes {stable_mosaic.version = 11 : i64} {
  func.func @_ln_qkproj_kernel(%arg0: i32, %arg1: memref<16x32xf32, #tpu.memory_space<vmem>>, %arg2: memref<32x64xf32, #tpu.memory_space<vmem>>, %arg3: memref<1x64xf32, #tpu.memory_space<vmem>>, %arg4: memref<1x32xf32, #tpu.memory_space<vmem>>, %arg5: memref<1x32xf32, #tpu.memory_space<vmem>>, %arg6: memref<16x64xf32, #tpu.memory_space<vmem>>) attributes {dimension_semantics = [#tpu.dimension_semantics<parallel>], iteration_bounds = array<i64: 1>, scalar_prefetch = 0 : i64, scratch_operands = 0 : i64, tpu.core_type = #tpu.core_type<tc>, window_params = [{transform_indices = @transform_0, window_bounds = array<i64: 16, 32>}, {pipeline_mode = #tpu.pipeline_mode<synchronous>, transform_indices = @transform_1, window_bounds = array<i64: 32, 64>}, {pipeline_mode = #tpu.pipeline_mode<synchronous>, transform_indices = @transform_2, window_bounds = array<i64: 1, 64>}, {pipeline_mode = #tpu.pipeline_mode<synchronous>, transform_indices = @transform_3, window_bounds = array<i64: 1, 32>}, {pipeline_mode = #tpu.pipeline_mode<synchronous>, transform_indices = @transform_4, window_bounds = array<i64: 1, 32>}, {transform_indices = @transform_5, window_bounds = array<i64: 16, 64>}]} {
    %c0 = arith.constant 0 : index
    %c0_0 = arith.constant 0 : index
    %0 = vector.load %arg1[%c0, %c0_0] : memref<16x32xf32, #tpu.memory_space<vmem>>, vector<16x32xf32>
    %cst = arith.constant dense<0.000000e+00> : vector<16xf32>
    %1 = vector.multi_reduction <add>, %0, %cst [1] : vector<16x32xf32> to vector<16xf32>
    %2 = vector.shape_cast %1 : vector<16xf32> to vector<16x1xf32>
    %cst_1 = arith.constant 3.200000e+01 : f32
    %3 = vector.broadcast %cst_1 : f32 to vector<16x1xf32>
    %4 = arith.divf %2, %3 : vector<16x1xf32>
    %5 = vector.broadcast %4 : vector<16x1xf32> to vector<16x32xf32>
    %6 = arith.subf %0, %5 : vector<16x32xf32>
    %7 = arith.mulf %6, %6 : vector<16x32xf32>
    %cst_2 = arith.constant dense<0.000000e+00> : vector<16xf32>
    %8 = vector.multi_reduction <add>, %7, %cst_2 [1] : vector<16x32xf32> to vector<16xf32>
    %9 = vector.shape_cast %8 : vector<16xf32> to vector<16x1xf32>
    %cst_3 = arith.constant 3.200000e+01 : f32
    %10 = vector.broadcast %cst_3 : f32 to vector<16x1xf32>
    %11 = arith.divf %9, %10 : vector<16x1xf32>
    %cst_4 = arith.constant 9.99999974E-6 : f32
    %12 = vector.broadcast %cst_4 : f32 to vector<16x1xf32>
    %13 = arith.addf %11, %12 : vector<16x1xf32>
    %14 = math.rsqrt %13 : vector<16x1xf32>
    %15 = vector.broadcast %14 : vector<16x1xf32> to vector<16x32xf32>
    %16 = arith.mulf %6, %15 : vector<16x32xf32>
    %c0_5 = arith.constant 0 : index
    %c0_6 = arith.constant 0 : index
    %17 = vector.load %arg4[%c0_5, %c0_6] : memref<1x32xf32, #tpu.memory_space<vmem>>, vector<1x32xf32>
    %18 = vector.broadcast %17 : vector<1x32xf32> to vector<16x32xf32>
    %19 = arith.mulf %16, %18 : vector<16x32xf32>
    %c0_7 = arith.constant 0 : index
    %c0_8 = arith.constant 0 : index
    %20 = vector.load %arg5[%c0_7, %c0_8] : memref<1x32xf32, #tpu.memory_space<vmem>>, vector<1x32xf32>
    %21 = vector.broadcast %20 : vector<1x32xf32> to vector<16x32xf32>
    %22 = arith.addf %19, %21 : vector<16x32xf32>
    %c0_9 = arith.constant 0 : index
    %c0_10 = arith.constant 0 : index
    %23 = vector.load %arg2[%c0_9, %c0_10] : memref<32x64xf32, #tpu.memory_space<vmem>>, vector<32x64xf32>
    %cst_11 = arith.constant dense<0.000000e+00> : vector<16x64xf32>
    %24 = tpu.matmul %22, %23, %cst_11 {dimension_numbers = #tpu.dot_dimension_numbers<[1], [0], [0], [1], [0, 0, 1, 1], [], []>} : vector<16x32xf32>, vector<32x64xf32>, vector<16x64xf32> -> vector<16x64xf32>
    %c0_12 = arith.constant 0 : index
    %c0_13 = arith.constant 0 : index
    %25 = vector.load %arg3[%c0_12, %c0_13] : memref<1x64xf32, #tpu.memory_space<vmem>>, vector<1x64xf32>
    %26 = vector.broadcast %25 : vector<1x64xf32> to vector<16x64xf32>
    %27 = arith.addf %24, %26 : vector<16x64xf32>
    %c0_14 = arith.constant 0 : index
    %c0_15 = arith.constant 0 : index
    %28 = vector.load %arg6[%c0_14, %c0_15] : memref<16x64xf32, #tpu.memory_space<vmem>>, vector<16x64xf32>
    tpu.vector_store %arg6[%c0_14, %c0_15], %27 {strides = array<i32>} : memref<16x64xf32, #tpu.memory_space<vmem>>, vector<16x64xf32>,
    return
  }
  func.func @transform_0(%arg0: i32) -> (i32, i32) {
    %c0_i32 = arith.constant 0 : i32
    %c0_i32_0 = arith.constant 0 : i32
    return %arg0, %c0_i32 : i32, i32
  }
  func.func @transform_1(%arg0: i32) -> (i32, i32) {
    %c0_i32 = arith.constant 0 : i32
    %c0_i32_0 = arith.constant 0 : i32
    %c0_i32_1 = arith.constant 0 : i32
    return %c0_i32, %c0_i32_0 : i32, i32
  }
  func.func @transform_2(%arg0: i32) -> (i32, i32) {
    %c0_i32 = arith.constant 0 : i32
    %c0_i32_0 = arith.constant 0 : i32
    %c0_i32_1 = arith.constant 0 : i32
    return %c0_i32, %c0_i32_0 : i32, i32
  }
  func.func @transform_3(%arg0: i32) -> (i32, i32) {
    %c0_i32 = arith.constant 0 : i32
    %c0_i32_0 = arith.constant 0 : i32
    %c0_i32_1 = arith.constant 0 : i32
    return %c0_i32, %c0_i32_0 : i32, i32
  }
  func.func @transform_4(%arg0: i32) -> (i32, i32) {
    %c0_i32 = arith.constant 0 : i32
    %c0_i32_0 = arith.constant 0 : i32
    %c0_i32_1 = arith.constant 0 : i32
    return %c0_i32, %c0_i32_0 : i32, i32
  }
  func.func @transform_5(%arg0: i32) -> (i32, i32) {
    %c0_i32 = arith.constant 0 : i32
    %c0_i32_0 = arith.constant 0 : i32
    return %arg0, %c0_i32 : i32, i32
  }
}

</mosaic_0001>

<llo_original>
// kernel: tpu_custom_call.1
$region0: #{tpu_custom_call.1}
  #allocation0 [shape = 'u32[]', space=smem, size = 0x4, offset = 0x4, fixed_abs, tag = 'smem constant byte address 0x4 - core index']
  #allocation1 [shape = 'u32[144,128]{1,0:T(1,128)}', space=vmem, size = 0x12000, scoped, tag = 'internal scratch']
  %s0 = inlined_call_operand.hbm [shape: f32[16,32], index: 0, kind: input, shape index: {}]
  %s1 = inlined_call_operand.hbm [shape: f32[32,64], index: 1, kind: input, shape index: {}]
  %s2 = inlined_call_operand.vmem [shape: f32[1,64], index: 2, kind: input, shape index: {}]
  %s3 = inlined_call_operand.vmem [shape: f32[1,32], index: 3, kind: input, shape index: {}]
  %s4 = inlined_call_operand.vmem [shape: f32[1,32], index: 4, kind: input, shape index: {}]
  %s5 = inlined_call_operand.hbm [shape: f32[16,64], index: 5, kind: output, shape index: {}]
  %s6 = sld [smem:[#allocation0]]
  $region38: #{tpu_custom_call.1} parent=0
    _
  %s8 = ssub.s32 1, %s6
  %s9 = scalar_select 0, %s8, %s6
  $region1: #{tpu_custom_call.1} parent=0
    #allocation2 [shape = 'u8[8192]{0}', space=vmem, size = 0x2000, scoped, tag = 'input window, operand 0, single buffered']
    #allocation3 [shape = 's32[1]{0}', space=sflag, size = 0x4, scoped, tag = 'scoped memory for tpu_custom_call.1']
    #allocation4 [shape = 's32[1]{0}', space=sflag, size = 0x4, scoped, tag = 'scoped memory for tpu_custom_call.1']
    #allocation5 [shape = 'u8[16384]{0}', space=vmem, size = 0x4000, scoped, tag = 'input window, operand 1, single buffered']
    #allocation6 [shape = 's32[1]{0}', space=sflag, size = 0x4, scoped, tag = 'scoped memory for tpu_custom_call.1']
    #allocation7 [shape = 'u8[8192]{0}', space=vmem, size = 0x2000, scoped, tag = 'output window, operand 0, single buffered']
    %10 = vsyncpa [#allocation3], 0
    %11 = vsyncpa [#allocation6], 0
    %12 = vsyncpa [#allocation4], 0
    // Predicated region
    $region2: #{tpu_custom_call.1} parent=1 // pred_check
      _
    $region3: #{tpu_custom_call.1} parent=1 // pred_check_branch
      %14 = sbr.rel (0) target = $region5
    $region4: #{tpu_custom_call.1} parent=1 // pred_region
      %s16 = ssub.s32 256, 256
      %17 = vsyncadd [#allocation3], %s16
      %s18 = sshll.u32 [#allocation2], 4
      %s19 = int_to_ptr.vmem [resolvable:$true] %s18
      %24 = dma.hbm_to_vmem [thread:$0]  %s0, 256, %s19, [#allocation3], 128, 128, 8
    $region5: #{tpu_custom_call.1} parent=1 // pred_fallthru
      _
    // Predicated region
    $region6: #{tpu_custom_call.1} parent=1 // pred_check
      _
    $region7: #{tpu_custom_call.1} parent=1 // pred_check_branch
      %26 = sbr.rel (0) target = $region9
    $region8: #{tpu_custom_call.1} parent=1 // pred_region
      %s28 = ssub.s32 512, 512
      %29 = vsyncadd [#allocation6], %s28
      %s30 = sshll.u32 [#allocation5], 4
      %s31 = int_to_ptr.vmem [resolvable:$true] %s30
      %36 = dma.hbm_to_vmem [thread:$0]  %s1, 512, %s31, [#allocation6], 128, 128, 8
    $region9: #{tpu_custom_call.1} parent=1 // pred_fallthru
      _
    // Predicated region
    $region10: #{tpu_custom_call.1} parent=1 // pred_check
      _
    $region11: #{tpu_custom_call.1} parent=1 // pred_check_branch
      %38 = sbr.rel (0) target = $region13
    $region12: #{tpu_custom_call.1} parent=1 // pred_region
      _
    $region13: #{tpu_custom_call.1} parent=1 // pred_fallthru
      _
    // Predicated region
    $region14: #{tpu_custom_call.1} parent=1 // pred_check
      _
    $region15: #{tpu_custom_call.1} parent=1 // pred_check_branch
      %40 = sbr.rel (0) target = $region17
    $region16: #{tpu_custom_call.1} parent=1 // pred_region
      _
    $region17: #{tpu_custom_call.1} parent=1 // pred_fallthru
      _
    // Predicated region
    $region18: #{tpu_custom_call.1} parent=1 // pred_check
      _
    $region19: #{tpu_custom_call.1} parent=1 // pred_check_branch
      %42 = sbr.rel (0) target = $region21
    $region20: #{tpu_custom_call.1} parent=1 // pred_region
      _
    $region21: #{tpu_custom_call.1} parent=1 // pred_fallthru
      _
    // Predicated region
    $region22: #{tpu_custom_call.1} parent=1 // pred_check
      _
    $region23: #{tpu_custom_call.1} parent=1 // pred_check_branch
      %44 = sbr.rel (0) target = $region25
    $region24: #{tpu_custom_call.1} parent=1 // pred_region
      %45 = dma.done [#allocation3], 256
    $region25: #{tpu_custom_call.1} parent=1 // pred_fallthru
      _
    // Predicated region
    $region26: #{tpu_custom_call.1} parent=1 // pred_check
      _
    $region27: #{tpu_custom_call.1} parent=1 // pred_check_branch
      %47 = sbr.rel (0) target = $region29
    $region28: #{tpu_custom_call.1} parent=1 // pred_region
      %48 = dma.done [#allocation6], 512
    $region29: #{tpu_custom_call.1} parent=1 // pred_fallthru
      _
    %v49 = vld [vmem:[#allocation2] sm:$0xff]
    %v50 = vld [vmem:[#allocation2 + $0x8] sm:$0xff]
    %vm51 = vcmask 261120
    %v52 = vsel %vm51, %v49, 0.0
    %53 = vadd.xlane.f32.xlu0 %v52
    %v54 = vpop.xlane.xlu0 %53
    %v55 = vsel %vm51, %v50, 0.0
    %56 = vadd.xlane.f32.xlu0 %v55
    %v57 = vpop.xlane.xlu0 %56
    %v58 = vrcp.pop 32.0
    %v59 = vmul.f32 %v54, %v58
    %v60 = vmul.f32 %v57, %v58
    %v61 = vsub.f32 %v49, %v59
    %v62 = vsub.f32 %v50, %v60
    %v63 = vmul.f32 %v61, %v61
    %v64 = vmul.f32 %v62, %v62
    %v65 = vsel %vm51, %v63, 0.0
    %66 = vadd.xlane.f32.xlu0 %v65
    %v67 = vpop.xlane.xlu0 %66
    %v68 = vsel %vm51, %v64, 0.0
    %69 = vadd.xlane.f32.xlu0 %v68
    %v70 = vpop.xlane.xlu0 %69
    %v71 = vmul.f32 %v67, %v58
    %v72 = vmul.f32 %v70, %v58
    %v73 = vadd.f32 %v71, 1e-05
    %v74 = vadd.f32 %v72, 1e-05
    %v75 = vrsqrt.pop %v73
    %v76 = vrsqrt.pop %v74
    %v77 = vmul.f32 %v61, %v75
    %v78 = vmul.f32 %v62, %v76
    %v79 = vld [vmem:[%s3] sm:$0x1]
    %v81 = vlaneseq
    %v82 = vshrl.u32 %v81, 7
    %v83 = vsub.s32 0, %v82
    %v84 = vrot.slane %v79, %v83
    %v86 = vmul.f32 %v77, %v84
    %v87 = vmul.f32 %v78, %v84
    %v88 = vld [vmem:[%s4] sm:$0x1]
    %v90 = vlaneseq
    %v91 = vshrl.u32 %v90, 7
    %v92 = vsub.s32 0, %v91
    %v93 = vrot.slane %v88, %v92
    %v95 = vadd.f32 %v86, %v93
    %v96 = vadd.f32 %v87, %v93
    %v97 = vld [vmem:[#allocation5] sm:$0xff]
    %v98 = vld [vmem:[#allocation5 + $0x8] sm:$0xff]
    %v99 = vld [vmem:[#allocation5 + $0x10] sm:$0xff]
    %v100 = vld [vmem:[#allocation5 + $0x18] sm:$0xff]
    %v101 = vld [vmem:[%s2] sm:$0x1]
    %v103 = vlaneseq
    %v104 = vshrl.u32 %v103, 7
    %v105 = vsub.s32 0, %v104
    %v106 = vrot.slane %v101, %v105
    %v109 = vsel %vm51, %v95, 0
    %v112 = vsel %vm51, %v96, 0
    %114 = vmatprep.subr.mxu0 0.0
    %115 = vmatpush1.msra.mxu0 0.0
    %116 = vmatprep.subr.mxu0 0.0
    %117 = vmatpush1.msra.mxu0 0.0
    %118 = vmatprep.subr.mxu0 0.0
    %119 = vmatpush1.msra.mxu0 0.0
    %120 = vmatprep.subr.mxu0 0.0
    %121 = vmatpush1.msra.mxu0 0.0
    %122 = vmatprep.subr.mxu0 0.0
    %123 = vmatpush1.msra.mxu0 0.0
    %124 = vmatprep.subr.mxu0 0.0
    %125 = vmatpush1.msra.mxu0 0.0
    %126 = vmatprep.subr.mxu0 0.0
    %127 = vmatpush1.msra.mxu0 0.0
    %128 = vmatprep.subr.mxu0 0.0
    %129 = vmatpush1.msra.mxu0 0.0
    %130 = vmatprep.subr.mxu0 0.0
    %131 = vmatpush1.msra.mxu0 0.0
    %132 = vmatprep.subr.mxu0 0.0
    %133 = vmatpush1.msra.mxu0 0.0
    %134 = vmatprep.subr.mxu0 0.0
    %135 = vmatpush1.msra.mxu0 0.0
    %136 = vmatprep.subr.mxu0 0.0
    %137 = vmatpush1.msra.mxu0 0.0
    %138 = vmatprep.subr.mxu0 0.0
    %139 = vmatpush1.msra.mxu0 %v100
    %140 = vmatprep.subr.mxu0 0.0
    %141 = vmatpush1.msra.mxu0 %v99
    %142 = vmatprep.subr.mxu0 0.0
    %143 = vmatpush1.msra.mxu0 %v98
    %144 = vmatprep.subr.mxu0 0.0
    %145 = vmatpush1.msra.mxu0 %v97
    %146 = vmatprep.subr.mxu0 0.0
    %147 = vmatpush2.msra.mxu0 0.0
    %148 = vmatprep.subr.mxu0 0.0
    %149 = vmatpush2.msra.mxu0 0.0
    %150 = vmatprep.subr.mxu0 0.0
    %151 = vmatpush2.msra.mxu0 0.0
    %152 = vmatprep.subr.mxu0 0.0
    %153 = vmatpush2.msra.mxu0 0.0
    %154 = vmatprep.subr.mxu0 0.0
    %155 = vmatpush2.msra.mxu0 0.0
    %156 = vmatprep.subr.mxu0 0.0
    %157 = vmatpush2.msra.mxu0 0.0
    %158 = vmatprep.subr.mxu0 0.0
    %159 = vmatpush2.msra.mxu0 0.0
    %160 = vmatprep.subr.mxu0 0.0
    %161 = vmatpush2.msra.mxu0 0.0
    %162 = vmatprep.subr.mxu0 0.0
    %163 = vmatpush2.msra.mxu0 0.0
    %164 = vmatprep.subr.mxu0 0.0
    %165 = vmatpush2.msra.mxu0 0.0
    %166 = vmatprep.subr.mxu0 0.0
    %167 = vmatpush2.msra.mxu0 0.0
    %168 = vmatprep.subr.mxu0 0.0
    %169 = vmatpush2.msra.mxu0 0.0
    %170 = vmatprep.subr.mxu0 0.0
    %171 = vmatpush2.msra.mxu0 0.0
    %172 = vmatprep.subr.mxu0 0.0
    %173 = vmatpush2.msra.mxu0 0.0
    %174 = vmatprep.subr.mxu0 0.0
    %175 = vmatpush2.msra.mxu0 0.0
    %176 = vmatprep.subr.mxu0 0.0
    %177 = vmatpush2.msra.mxu0 0.0
    %178 = vmatprep.mubr.f32.mxu0 0.0
    %179 = vmatmul.mubr.f32.gmra.mxu0 %v109
    %v180 = vpop.f32.mrf.mxu0
    %v181 = vadd.f32 %v106, %v180
    %v182 = vpop.f32.mrf.mxu0
    %183 = vmatprep.mubr.f32.mxu0 0.0
    %184 = vmatmul.mubr.f32.gmra.mxu0 %v112
    %v185 = vpop.f32.mrf.mxu0
    %v186 = vadd.f32 %v106, %v185
    %v187 = vpop.f32.mrf.mxu0
    %188 = vdwg.mxu0
    %vm189 = vcmask 523264
    %190 = vst.msk [vmem:[#allocation7] sm:$0xff] %vm189, %v181
    %191 = vst.msk [vmem:[#allocation7 + $0x8] sm:$0xff] %vm189, %v186
    // Predicated region
    $region30: #{tpu_custom_call.1} parent=1 // pred_check
      _
    $region31: #{tpu_custom_call.1} parent=1 // pred_check_branch
      %193 = sbr.rel (0) target = $region33
    $region32: #{tpu_custom_call.1} parent=1 // pred_region
      %s195 = ssub.s32 256, 256
      %196 = vsyncadd [#allocation4], %s195
      %s197 = sshll.u32 [#allocation7], 4
      %s198 = int_to_ptr.vmem [resolvable:$true] %s197
      %203 = dma.vmem_to_hbm [thread:$0]  %s198, 256, %s5, [#allocation4], 128, 128, 8
    $region33: #{tpu_custom_call.1} parent=1 // pred_fallthru
      _
    // Predicated region
    $region34: #{tpu_custom_call.1} parent=1 // pred_check
      _
    $region35: #{tpu_custom_call.1} parent=1 // pred_check_branch
      %205 = sbr.rel (0) target = $region37
    $region36: #{tpu_custom_call.1} parent=1 // pred_region
      %206 = dma.done [#allocation4], 256
    $region37: #{tpu_custom_call.1} parent=1 // pred_fallthru
      _
    %207 = vsyncpa [#allocation3], 1
    %208 = vsyncpa [#allocation6], 1
    %209 = vsyncpa [#allocation4], 1

// kernel: tpu_custom_call.1
$region0: #{tpu_custom_call.1}
  #allocation0 [shape = 'u32[]', space=smem, size = 0x4, offset = 0x4, fixed_abs, tag = 'smem constant byte address 0x4 - core index']
  #allocation1 [shape = 'u32[144,128]{1,0:T(1,128)}', space=vmem, size = 0x12000, scoped, tag = 'internal scratch']
  %s0 = inlined_call_operand.hbm [shape: f32[16,32], index: 0, kind: input, shape index: {}]
  %s1 = inlined_call_operand.hbm [shape: f32[32,64], index: 1, kind: input, shape index: {}]
  %s2 = inlined_call_operand.vmem [shape: f32[1,64], index: 2, kind: input, shape index: {}]
  %s3 = inlined_call_operand.vmem [shape: f32[1,32], index: 3, kind: input, shape index: {}]
  %s4 = inlined_call_operand.vmem [shape: f32[1,32], index: 4, kind: input, shape index: {}]
  %s5 = inlined_call_operand.hbm [shape: f32[16,64], index: 5, kind: output, shape index: {}]
  %s6 = sld [smem:[#allocation0]]
  $region38: #{tpu_custom_call.1} parent=0
    _
  %s8 = ssub.s32 1, %s6
  %s9 = scalar_select 0, %s8, %s6
  $region1: #{tpu_custom_call.1} parent=0
    #allocation2 [shape = 'u8[8192]{0}', space=vmem, size = 0x2000, scoped, tag = 'input window, operand 0, single buffered']
    #allocation3 [shape = 's32[1]{0}', space=sflag, size = 0x4, scoped, tag = 'scoped memory for tpu_custom_call.1']
    #allocation4 [shape = 's32[1]{0}', space=sflag, size = 0x4, scoped, tag = 'scoped memory for tpu_custom_call.1']
    #allocation5 [shape = 'u8[16384]{0}', space=vmem, size = 0x4000, scoped, tag = 'input window, operand 1, single buffered']
    #allocation6 [shape = 's32[1]{0}', space=sflag, size = 0x4, scoped, tag = 'scoped memory for tpu_custom_call.1']
    #allocation7 [shape = 'u8[8192]{0}', space=vmem, size = 0x2000, scoped, tag = 'output window, operand 0, single buffered']
    %10 = vsyncpa [#allocation3], 0
    %11 = vsyncpa [#allocation6], 0
    %12 = vsyncpa [#allocation4], 0
    // Predicated region
    $region2: #{tpu_custom_call.1} parent=1 // pred_check
      _
    $region3: #{tpu_custom_call.1} parent=1 // pred_check_branch
      %14 = sbr.rel (0) target = $region5
    $region4: #{tpu_custom_call.1} parent=1 // pred_region
      %s16 = ssub.s32 256, 256
      %17 = vsyncadd [#allocation3], %s16
      %s18 = sshll.u32 [#allocation2], 4
      %s19 = int_to_ptr.vmem [resolvable:$true] %s18
      %24 = dma.hbm_to_vmem [thread:$0]  %s0, 256, %s19, [#allocation3], 128, 128, 8
    $region5: #{tpu_custom_call.1} parent=1 // pred_fallthru
      _
    // Predicated region
    $region6: #{tpu_custom_call.1} parent=1 // pred_check
      _
    $region7: #{tpu_custom_call.1} parent=1 // pred_check_branch
      %26 = sbr.rel (0) target = $region9
    $region8: #{tpu_custom_call.1} parent=1 // pred_region
      %s28 = ssub.s32 512, 512
      %29 = vsyncadd [#allocation6], %s28
      %s30 = sshll.u32 [#allocation5], 4
      %s31 = int_to_ptr.vmem [resolvable:$true] %s30
      %36 = dma.hbm_to_vmem [thread:$0]  %s1, 512, %s31, [#allocation6], 128, 128, 8
    $region9: #{tpu_custom_call.1} parent=1 // pred_fallthru
      _
    // Predicated region
    $region10: #{tpu_custom_call.1} parent=1 // pred_check
      _
    $region11: #{tpu_custom_call.1} parent=1 // pred_check_branch
      %38 = sbr.rel (0) target = $region13
    $region12: #{tpu_custom_call.1} parent=1 // pred_region
      _
    $region13: #{tpu_custom_call.1} parent=1 // pred_fallthru
      _
    // Predicated region
    $region14: #{tpu_custom_call.1} parent=1 // pred_check
      _
    $region15: #{tpu_custom_call.1} parent=1 // pred_check_branch
      %40 = sbr.rel (0) target = $region17
    $region16: #{tpu_custom_call.1} parent=1 // pred_region
      _
    $region17: #{tpu_custom_call.1} parent=1 // pred_fallthru
      _
    // Predicated region
    $region18: #{tpu_custom_call.1} parent=1 // pred_check
      _
    $region19: #{tpu_custom_call.1} parent=1 // pred_check_branch
      %42 = sbr.rel (0) target = $region21
    $region20: #{tpu_custom_call.1} parent=1 // pred_region
      _
    $region21: #{tpu_custom_call.1} parent=1 // pred_fallthru
      _
    // Predicated region
    $region22: #{tpu_custom_call.1} parent=1 // pred_check
      _
    $region23: #{tpu_custom_call.1} parent=1 // pred_check_branch
      %44 = sbr.rel (0) target = $region25
    $region24: #{tpu_custom_call.1} parent=1 // pred_region
      %45 = dma.done [#allocation3], 256
    $region25: #{tpu_custom_call.1} parent=1 // pred_fallthru
      _
    // Predicated region
    $region26: #{tpu_custom_call.1} parent=1 // pred_check
      _
    $region27: #{tpu_custom_call.1} parent=1 // pred_check_branch
      %47 = sbr.rel (0) target = $region29
    $region28: #{tpu_custom_call.1} parent=1 // pred_region
      %48 = dma.done [#allocation6], 512
    $region29: #{tpu_custom_call.1} parent=1 // pred_fallthru
      _
    %v49 = vld [vmem:[#allocation2] sm:$0xff]
    %v50 = vld [vmem:[#allocation2 + $0x8] sm:$0xff]
    %vm51 = vcmask 261120
    %v52 = vsel %vm51, %v49, 0.0
    %53 = vadd.xlane.f32.xlu0 %v52
    %v54 = vpop.xlane.xlu0 %53
    %v55 = vsel %vm51, %v50, 0.0
    %56 = vadd.xlane.f32.xlu0 %v55
    %v57 = vpop.xlane.xlu0 %56
    %v58 = vrcp.pop 32.0
    %v59 = vmul.f32 %v54, %v58
    %v60 = vmul.f32 %v57, %v58
    %v61 = vsub.f32 %v49, %v59
    %v62 = vsub.f32 %v50, %v60
    %v63 = vmul.f32 %v61, %v61
    %v64 = vmul.f32 %v62, %v62
    %v65 = vsel %vm51, %v63, 0.0
    %66 = vadd.xlane.f32.xlu0 %v65
    %v67 = vpop.xlane.xlu0 %66
    %v68 = vsel %vm51, %v64, 0.0
    %69 = vadd.xlane.f32.xlu0 %v68
    %v70 = vpop.xlane.xlu0 %69
    %v71 = vmul.f32 %v67, %v58
    %v72 = vmul.f32 %v70, %v58
    %v73 = vadd.f32 %v71, 1e-05
    %v74 = vadd.f32 %v72, 1e-05
    %v75 = vrsqrt.pop %v73
    %v76 = vrsqrt.pop %v74
    %v77 = vmul.f32 %v61, %v75
    %v78 = vmul.f32 %v62, %v76
    %v79 = vld [vmem:[%s3] sm:$0x1]
    %v81 = vlaneseq
    %v82 = vshrl.u32 %v81, 7
    %v83 = vsub.s32 0, %v82
    %v84 = vrot.slane %v79, %v83
    %v86 = vmul.f32 %v77, %v84
    %v87 = vmul.f32 %v78, %v84
    %v88 = vld [vmem:[%s4] sm:$0x1]
    %v90 = vlaneseq
    %v91 = vshrl.u32 %v90, 7
    %v92 = vsub.s32 0, %v91
    %v93 = vrot.slane %v88, %v92
    %v95 = vadd.f32 %v86, %v93
    %v96 = vadd.f32 %v87, %v93
    %v97 = vld [vmem:[#allocation5] sm:$0xff]
    %v98 = vld [vmem:[#allocation5 + $0x8] sm:$0xff]
    %v99 = vld [vmem:[#allocation5 + $0x10] sm:$0xff]
    %v100 = vld [vmem:[#allocation5 + $0x18] sm:$0xff]
    %v101 = vld [vmem:[%s2] sm:$0x1]
    %v103 = vlaneseq
    %v104 = vshrl.u32 %v103, 7
    %v105 = vsub.s32 0, %v104
    %v106 = vrot.slane %v101, %v105
    %v109 = vsel %vm51, %v95, 0
    %v112 = vsel %vm51, %v96, 0
    %114 = vmatprep.subr.mxu0 0.0
    %115 = vmatpush1.msra.mxu0 0.0
    %116 = vmatprep.subr.mxu0 0.0
    %117 = vmatpush1.msra.mxu0 0.0
    %118 = vmatprep.subr.mxu0 0.0
    %119 = vmatpush1.msra.mxu0 0.0
    %120 = vmatprep.subr.mxu0 0.0
    %121 = vmatpush1.msra.mxu0 0.0
    %122 = vmatprep.subr.mxu0 0.0
    %123 = vmatpush1.msra.mxu0 0.0
    %124 = vmatprep.subr.mxu0 0.0
    %125 = vmatpush1.msra.mxu0 0.0
    %126 = vmatprep.subr.mxu0 0.0
    %127 = vmatpush1.msra.mxu0 0.0
    %128 = vmatprep.subr.mxu0 0.0
    %129 = vmatpush1.msra.mxu0 0.0
    %130 = vmatprep.subr.mxu0 0.0
    %131 = vmatpush1.msra.mxu0 0.0
    %132 = vmatprep.subr.mxu0 0.0
    %133 = vmatpush1.msra.mxu0 0.0
    %134 = vmatprep.subr.mxu0 0.0
    %135 = vmatpush1.msra.mxu0 0.0
    %136 = vmatprep.subr.mxu0 0.0
    %137 = vmatpush1.msra.mxu0 0.0
    %138 = vmatprep.subr.mxu0 0.0
    %139 = vmatpush1.msra.mxu0 %v100
    %140 = vmatprep.subr.mxu0 0.0
    %141 = vmatpush1.msra.mxu0 %v99
    %142 = vmatprep.subr.mxu0 0.0
    %143 = vmatpush1.msra.mxu0 %v98
    %144 = vmatprep.subr.mxu0 0.0
    %145 = vmatpush1.msra.mxu0 %v97
    %146 = vmatprep.subr.mxu0 0.0
    %147 = vmatpush2.msra.mxu0 0.0
    %148 = vmatprep.subr.mxu0 0.0
    %149 = vmatpush2.msra.mxu0 0.0
    %150 = vmatprep.subr.mxu0 0.0
    %151 = vmatpush2.msra.mxu0 0.0
    %152 = vmatprep.subr.mxu0 0.0
    %153 = vmatpush2.msra.mxu0 0.0
    %154 = vmatprep.subr.mxu0 0.0
    %155 = vmatpush2.msra.mxu0 0.0
    %156 = vmatprep.subr.mxu0 0.0
    %157 = vmatpush2.msra.mxu0 0.0
    %158 = vmatprep.subr.mxu0 0.0
    %159 = vmatpush2.msra.mxu0 0.0
    %160 = vmatprep.subr.mxu0 0.0
    %161 = vmatpush2.msra.mxu0 0.0
    %162 = vmatprep.subr.mxu0 0.0
    %163 = vmatpush2.msra.mxu0 0.0
    %164 = vmatprep.subr.mxu0 0.0
    %165 = vmatpush2.msra.mxu0 0.0
    %166 = vmatprep.subr.mxu0 0.0
    %167 = vmatpush2.msra.mxu0 0.0
    %168 = vmatprep.subr.mxu0 0.0
    %169 = vmatpush2.msra.mxu0 0.0
    %170 = vmatprep.subr.mxu0 0.0
    %171 = vmatpush2.msra.mxu0 0.0
    %172 = vmatprep.subr.mxu0 0.0
    %173 = vmatpush2.msra.mxu0 0.0
    %174 = vmatprep.subr.mxu0 0.0
    %175 = vmatpush2.msra.mxu0 0.0
    %176 = vmatprep.subr.mxu0 0.0
    %177 = vmatpush2.msra.mxu0 0.0
    %178 = vmatprep.mubr.f32.mxu0 0.0
    %179 = vmatmul.mubr.f32.gmra.mxu0 %v109
    %v180 = vpop.f32.mrf.mxu0
    %v181 = vadd.f32 %v106, %v180
    %v182 = vpop.f32.mrf.mxu0
    %183 = vmatprep.mubr.f32.mxu0 0.0
    %184 = vmatmul.mubr.f32.gmra.mxu0 %v112
    %v185 = vpop.f32.mrf.mxu0
    %v186 = vadd.f32 %v106, %v185
    %v187 = vpop.f32.mrf.mxu0
    %188 = vdwg.mxu0
    %vm189 = vcmask 523264
    %190 = vst.msk [vmem:[#allocation7] sm:$0xff] %vm189, %v181
    %191 = vst.msk [vmem:[#allocation7 + $0x8] sm:$0xff] %vm189, %v186
    // Predicated region
    $region30: #{tpu_custom_call.1} parent=1 // pred_check
      _
    $region31: #{tpu_custom_call.1} parent=1 // pred_check_branch
      %193 = sbr.rel (0) target = $region33
    $region32: #{tpu_custom_call.1} parent=1 // pred_region
      %s195 = ssub.s32 256, 256
      %196 = vsyncadd [#allocation4], %s195
      %s197 = sshll.u32 [#allocation7], 4
      %s198 = int_to_ptr.vmem [resolvable:$true] %s197
      %203 = dma.vmem_to_hbm [thread:$0]  %s198, 256, %s5, [#allocation4], 128, 128, 8
    $region33: #{tpu_custom_call.1} parent=1 // pred_fallthru
      _
    // Predicated region
    $region34: #{tpu_custom_call.1} parent=1 // pred_check
      _
    $region35: #{tpu_custom_call.1} parent=1 // pred_check_branch
      %205 = sbr.rel (0) target = $region37
    $region36: #{tpu_custom_call.1} parent=1 // pred_region
      %206 = dma.done [#allocation4], 256
    $region37: #{tpu_custom_call.1} parent=1 // pred_fallthru
      _
    %207 = vsyncpa [#allocation3], 1
    %208 = vsyncpa [#allocation6], 1
    %209 = vsyncpa [#allocation4], 1

</llo_original>
